<compile_context>
chip_gen: v7x
topology: tpu7x:2x2x1
jax: 0.10.0
libtpu: 0.0.40
codegen_flags: <defaults>
</compile_context>

<pallas_src>
import functools

import jax
import jax.numpy as jnp
from jax.experimental import pallas as pl
from jax.experimental.pallas import tpu as pltpu


def _round_up(x, m):
    return ((x + m - 1) // m) * m


def _fused_proto_kernel(x_ref, w_ref, o_ref):
    # x_ref: (tm, D) bf16 input tile
    # w_ref: (tn, D) bf16 weight tile (PyTorch (K, D) layout, no transpose)
    # o_ref: (tm, tn) f32 output tile
    o_ref[...] = jax.lax.dot_general(
        x_ref[...],
        w_ref[...],
        dimension_numbers=(((1,), (1,)), ((), ())),  # contract D of both: x @ W.T
        preferred_element_type=jnp.float32,
    ).astype(o_ref.dtype)


@functools.partial(jax.jit, static_argnames=("tm", "tn"))
def _fused_prototypes_matmul(x, w_fused, *, tm, tn):
    """x: (B, D) f32, w_fused: (K_pad, D) bf16, K_pad % tn == 0. Returns (B, K_pad) f32."""
    B, D = x.shape
    K_pad, D2 = w_fused.shape
    assert D == D2
    assert K_pad % tn == 0
    assert tm % 8 == 0

    # Pad batch to the sublane tile (static shapes -> this is a compile-time
    # decision; no-op when B is already a multiple of 8).
    B_pad = _round_up(B, 8)
    if B_pad != B:
        x = jnp.pad(x, ((0, B_pad - B), (0, 0)))

    x_bf16 = x.astype(jnp.bfloat16)  # halves activation DMA; f32 accumulation in-kernel

    tm_eff = min(tm, B_pad)
    grid = (pl.cdiv(B_pad, tm_eff), K_pad // tn)

    cost = pl.CostEstimate(
        flops=2 * B_pad * K_pad * D,
        transcendentals=0,
        bytes_accessed=2 * (B_pad * D + K_pad * D) + 4 * B_pad * K_pad,
    )

    out = pl.pallas_call(
        _fused_proto_kernel,
        out_shape=jax.ShapeDtypeStruct((B_pad, K_pad), jnp.float32),
        grid_spec=pltpu.PrefetchScalarGridSpec(
            num_scalar_prefetch=0,
            grid=grid,
            in_specs=[
                pl.BlockSpec((tm_eff, D), lambda i, j: (i, 0)),  # x tile (batch-major)
                pl.BlockSpec((tn, D), lambda i, j: (j, 0)),      # weight tile, (K, D) layout
            ],
            out_specs=pl.BlockSpec((tm_eff, tn), lambda i, j: (i, j)),
        ),
        compiler_params=pltpu.CompilerParams(
            dimension_semantics=("parallel", "parallel")
        ),
        cost_estimate=cost,
    )(x_bf16, w_fused)

    if B_pad != B:
        out = out[:B]
    return out


class PrototypesWrapperPallas:
    """JAX/Pallas equivalent of the PyTorch PrototypesWrapper module."""

    def __init__(self, output_dim, num_prototypes, key, *, max_tm=1024, max_tn=512):
        if not isinstance(num_prototypes, (list, tuple)):
            num_prototypes = [num_prototypes]
        self.num_heads = len(num_prototypes)
        self.num_prototypes = list(num_prototypes)
        self.output_dim = output_dim
        self._max_tm = max_tm  # multiple of 8 (f32/bf16 sublane-safe)

        # Per-head f32 master weights (nn.Linear(output_dim, k, bias=False).weight shape).
        self.weights = []
        bound = 1.0 / (output_dim ** 0.5)
        for k in num_prototypes:
            key, sub = jax.random.split(key)
            w = jax.random.uniform(
                sub, (k, output_dim), jnp.float32, minval=-bound, maxval=bound
            )
            self.weights.append(w)

        # --- One-time fusion/padding/cast of all heads (no per-call transpose). ---
        k_total = sum(num_prototypes)
        k_total_128 = _round_up(k_total, 128)
        tn = min(max_tn, k_total_128)
        # Keep >=2 tiles on the K (parallel) axis when possible so v7x's two
        # TensorCores both get work even when the batch collapses to one tile.
        if k_total_128 >= 256:
            tn = min(tn, max(128, ((k_total_128 // 2) // 128) * 128))
        self._tn = tn

        k_pad = _round_up(k_total, tn)
        w_cat = jnp.concatenate(self.weights, axis=0)  # (K_total, D)
        if k_pad > k_total:
            w_cat = jnp.pad(w_cat, ((0, k_pad - k_total), (0, 0)))
        self._w_fused = w_cat.astype(jnp.bfloat16)     # (K_pad, D), cast once

        # Per-head slices of the fused output.
        self._splits = []
        off = 0
        for k in num_prototypes:
            self._splits.append((off, k))
            off += k

    def __call__(self, x):
        out = _fused_prototypes_matmul(
            x, self._w_fused, tm=self._max_tm, tn=self._tn
        )
        return [out[:, s:s + k] for (s, k) in self._splits]


if __name__ == "__main__":
    key = jax.random.PRNGKey(0)
    key, xkey, wkey = jax.random.split(key, 3)

    B, D = 8, 32                  # batch, output_dim (embedding dim)
    num_prototypes = [64, 128]    # two prototype heads

    x = jax.random.normal(xkey, (B, D), jnp.float32)

    model = PrototypesWrapperPallas(D, num_prototypes, wkey)
    outs = model(x)
    outs = jax.block_until_ready(outs)

    # Correctness check against plain-JAX f32 reference (x @ W.T per head).
    # Tolerances loosened because the kernel computes in bf16 with f32 accumulation.
    for o, w in zip(outs, model.weights):
        ref = x @ w.T
        assert o.shape == ref.shape, (o.shape, ref.shape)
        assert jnp.allclose(o, ref, atol=2e-2, rtol=2e-2), (
            float(jnp.max(jnp.abs(o - ref)))
        )

    print("KERNEL_OK")
</pallas_src>

<mosaic_0001>
module attributes {stable_mosaic.version = 11 : i64} {
  func.func @_fused_proto_kernel(%arg0: i32, %arg1: i32, %arg2: memref<8x32xbf16, #tpu.memory_space<vmem>>, %arg3: memref<128x32xbf16, #tpu.memory_space<vmem>>, %arg4: memref<8x128xf32, #tpu.memory_space<vmem>>) attributes {dimension_semantics = [#tpu.dimension_semantics<parallel>, #tpu.dimension_semantics<parallel>], iteration_bounds = array<i64: 1, 2>, scalar_prefetch = 0 : i64, scratch_operands = 0 : i64, tpu.core_type = #tpu.core_type<tc>, window_params = [{transform_indices = @transform_0, window_bounds = array<i64: 8, 32>}, {transform_indices = @transform_1, window_bounds = array<i64: 128, 32>}, {transform_indices = @transform_2, window_bounds = array<i64: 8, 128>}]} {
    %c0 = arith.constant 0 : index
    %c0_0 = arith.constant 0 : index
    %0 = vector.load %arg2[%c0, %c0_0] : memref<8x32xbf16, #tpu.memory_space<vmem>>, vector<8x32xbf16>
    %c0_1 = arith.constant 0 : index
    %c0_2 = arith.constant 0 : index
    %1 = vector.load %arg3[%c0_1, %c0_2] : memref<128x32xbf16, #tpu.memory_space<vmem>>, vector<128x32xbf16>
    %cst = arith.constant dense<0.000000e+00> : vector<8x128xf32>
    %2 = tpu.matmul %0, %1, %cst {dimension_numbers = #tpu.dot_dimension_numbers<[1], [1], [0], [0], [0, 0, 1, 0], [], []>} : vector<8x32xbf16>, vector<128x32xbf16>, vector<8x128xf32> -> vector<8x128xf32>
    %c0_3 = arith.constant 0 : index
    %c0_4 = arith.constant 0 : index
    %3 = vector.load %arg4[%c0_3, %c0_4] : memref<8x128xf32, #tpu.memory_space<vmem>>, vector<8x128xf32>
    tpu.vector_store %arg4[%c0_3, %c0_4], %2 {strides = array<i32>} : memref<8x128xf32, #tpu.memory_space<vmem>>, vector<8x128xf32>,
    return
  }
  func.func @transform_0(%arg0: i32, %arg1: i32) -> (i32, i32) {
    %c0_i32 = arith.constant 0 : i32
    %c0_i32_0 = arith.constant 0 : i32
    return %arg0, %c0_i32 : i32, i32
  }
  func.func @transform_1(%arg0: i32, %arg1: i32) -> (i32, i32) {
    %c0_i32 = arith.constant 0 : i32
    %c0_i32_0 = arith.constant 0 : i32
    return %arg1, %c0_i32 : i32, i32
  }
  func.func @transform_2(%arg0: i32, %arg1: i32) -> (i32, i32) {
    %c0_i32 = arith.constant 0 : i32
    return %arg0, %arg1 : i32, i32
  }
}

</mosaic_0001>

<llo_original>
// kernel: _fused_prototypes_matmul.1
$region0: #{_fused_prototypes_matmul.1}
  #allocation0 [shape = 'u32[]', space=smem, size = 0x4, offset = 0x4, fixed_abs, tag = 'smem constant byte address 0x4 - core index']
  #allocation1 [shape = 'u32[144,128]{1,0:T(1,128)}', space=vmem, size = 0x12000, scoped, tag = 'internal scratch']
  %s0 = inlined_call_operand.vmem [shape: bf16[8,32], index: 0, kind: input, shape index: {}]
  %s1 = inlined_call_operand.vmem [shape: bf16[256,32], index: 1, kind: input, shape index: {}]
  %s2 = inlined_call_operand.hbm [shape: f32[8,256], index: 2, kind: output, shape index: {}]
  %s3 = sld [smem:[#allocation0]]
  $region41: #{_fused_prototypes_matmul.1} parent=0
    _
  %s5 = ssub.s32 1, %s3
  %s6 = scalar_select 0, %s5, %s3
  $region1: #{_fused_prototypes_matmul.1} parent=0
    #allocation2 [shape = 'u8[8192]{0}', space=vmem, size = 0x2000, scoped, tag = 'output window, operand 0']
    #allocation3 [shape = 's32[2]{0}', space=sflag, size = 0x8, scoped, tag = 'scoped memory for _fused_prototypes_matmul.1']
    %7 = vsyncpa [#allocation3], 0
    %s8 = scalar_lea.sflag [#allocation3], 1
    %9 = vsyncpa %s8, 0
    loop: start=0, step=1, limit=4
    $region2: #{_fused_prototypes_matmul.1} parent=1 // loop_pre_header
      _
    $region3: #{_fused_prototypes_matmul.1} parent=1 // loop_header
      %s11 = sphi 0, %s15
      %p12 = scmp.ge.s32.totalorder %s11, 4
      %s18 = sphi 0, %s30
      %s19 = sphi 0, %s26
      %s20 = sphi 0, %s18
      %s21 = sphi 0, %s19
      %s22 = sphi 0, %s20
      %s23 = sphi 0, %s21
      %s33 = sphi 0, %s35
      %s36 = sphi 0, %s33
      %s37 = sphi 0, %s36
      %s53 = sphi 0, %s37
      %s59 = sphi 0, %s61
      %s62 = sphi 0, %s59
      %s63 = sphi 0, %s62
      %s79 = sphi 0, %s63
      %s87 = sphi 0, %s89
      %s90 = sphi 0, %s87
      %s91 = sphi 0, %s90
      %s107 = sphi 0, %s91
    $region4: #{_fused_prototypes_matmul.1} parent=1 // loop_header_branch
      %14 = sbr.rel (%p12) target = $region8
    $region5: #{_fused_prototypes_matmul.1} parent=1 // loop_body
      %s16 = ssub.s32 %s11, 1
      %s17 = ssub.s32 %s11, 2
      %s24 = sadd.s32 1, %s19
      %p25 = scmp.ge.s32.totalorder %s24, 2
      %s26 = scalar_select %p25, 0, %s24
      %s27 = sadd.s32 1, %s18
      %s28 = scalar_select %p25, %s27, %s18
      %p29 = scmp.ge.s32.totalorder %s28, 1
      %s30 = scalar_select %p29, 0, %s28
      %s31 = ssub.s32 %s18, %s30
      %p32 = scmp.eq.s32.totalorder %s31, 0
      %s34 = sadd.s32 %s33, 1
      %s35 = scalar_select %p32, %s33, %s34
      %p38 = pneg %p32
      %p39 = scmp.eq.s32.totalorder %s11, 1
      %p40 = por %p38, %p39
      %p41 = scmp.ne.s32.totalorder %s33, %s36
      %p42 = scmp.eq.s32.totalorder %s11, 0
      %p43 = por %p41, %p42
      %p44 = scmp.ne.s32.totalorder %s33, %s36
      %p45 = scmp.eq.s32.totalorder %s16, 1
      %p46 = por %p44, %p45
      %p47 = scmp.ne.s32.totalorder %s36, %s37
      %p48 = scmp.eq.s32.totalorder %s16, 0
      %p49 = por %p47, %p48
      %p50 = scmp.ne.s32.totalorder %s36, %s37
      %p51 = scmp.eq.s32.totalorder %s17, 1
      %p52 = por %p50, %p51
      %p54 = scmp.ne.s32.totalorder %s37, %s53
      %p55 = scmp.eq.s32.totalorder %s17, 0
      %p56 = por %p54, %p55
      %s57 = ssub.s32 %s19, %s26
      %p58 = scmp.eq.s32.totalorder %s57, 0
      %s60 = sadd.s32 %s59, 1
      %s61 = scalar_select %p58, %s59, %s60
      %p64 = pneg %p58
      %p65 = scmp.eq.s32.totalorder %s11, 1
      %p66 = por %p64, %p65
      %p67 = scmp.ne.s32.totalorder %s59, %s62
      %p68 = scmp.eq.s32.totalorder %s11, 0
      %p69 = por %p67, %p68
      %p70 = scmp.ne.s32.totalorder %s59, %s62
      %p71 = scmp.eq.s32.totalorder %s16, 1
      %p72 = por %p70, %p71
      %p73 = scmp.ne.s32.totalorder %s62, %s63
      %p74 = scmp.eq.s32.totalorder %s16, 0
      %p75 = por %p73, %p74
      %p76 = scmp.ne.s32.totalorder %s62, %s63
      %p77 = scmp.eq.s32.totalorder %s17, 1
      %p78 = por %p76, %p77
      %p80 = scmp.ne.s32.totalorder %s63, %s79
      %p81 = scmp.eq.s32.totalorder %s17, 0
      %p82 = por %p80, %p81
      %s83 = ssub.s32 %s18, %s30
      %s84 = ssub.s32 %s19, %s26
      %s85 = sor.u32 %s83, %s84
      %p86 = scmp.eq.s32.totalorder %s85, 0
      %s88 = sadd.s32 %s87, 1
      %s89 = scalar_select %p86, %s87, %s88
      %p92 = pneg %p86
      %p93 = scmp.eq.s32.totalorder %s11, 1
      %p94 = por %p92, %p93
      %p95 = scmp.ne.s32.totalorder %s87, %s90
      %p96 = scmp.eq.s32.totalorder %s11, 0
      %p97 = por %p95, %p96
      %p98 = scmp.ne.s32.totalorder %s87, %s90
      %p99 = scmp.eq.s32.totalorder %s16, 1
      %p100 = por %p98, %p99
      %p101 = scmp.ne.s32.totalorder %s90, %s91
      %p102 = scmp.eq.s32.totalorder %s16, 0
      %p103 = por %p101, %p102
      %p104 = scmp.ne.s32.totalorder %s90, %s91
      %p105 = scmp.eq.s32.totalorder %s17, 1
      %p106 = por %p104, %p105
      %p108 = scmp.ne.s32.totalorder %s91, %s107
      %p109 = scmp.eq.s32.totalorder %s17, 0
      %p110 = por %p108, %p109
      %p111 = scmp.le.s32.totalorder 1, %s11
      %p112 = scmp.lt.s32.totalorder %s11, 3
      %p113 = pnand %p111, %p112
      %p114 = pneg %p113
      // Predicated region
      $region9: #{_fused_prototypes_matmul.1} parent=5 // pred_check
        _
      $region10: #{_fused_prototypes_matmul.1} parent=5 // pred_check_branch
        %116 = sbr.rel (%p113) target = $region12
      $region11: #{_fused_prototypes_matmul.1} parent=5 // pred_region
        %s117 = ssub.s32 %s11, 1
        // Predicated region
        $region13: #{_fused_prototypes_matmul.1} parent=11 // pred_check
          %p118 = pneg %p49
        $region14: #{_fused_prototypes_matmul.1} parent=11 // pred_check_branch
          %120 = sbr.rel (%p118) target = $region16
        $region15: #{_fused_prototypes_matmul.1} parent=11 // pred_region
          %p121 = scmp.lt.s32.totalorder %s20, 0
          %s122 = scalar_select %p121, %s20, 0
          %s123 = smul.addr %s122, 4
          %s124 = scalar_lea.vmem %s0, %s123
        $region16: #{_fused_prototypes_matmul.1} parent=11 // pred_fallthru
          _
      $region12: #{_fused_prototypes_matmul.1} parent=5 // pred_fallthru
        _
      %p125 = scmp.lt.s32.totalorder %s11, 2
      // Predicated region
      $region17: #{_fused_prototypes_matmul.1} parent=5 // pred_check
        %p126 = pneg %p125
      $region18: #{_fused_prototypes_matmul.1} parent=5 // pred_check_branch
        %128 = sbr.rel (%p126) target = $region20
      $region19: #{_fused_prototypes_matmul.1} parent=5 // pred_region
        // Predicated region
        $region21: #{_fused_prototypes_matmul.1} parent=19 // pred_check
          %p129 = pneg %p69
        $region22: #{_fused_prototypes_matmul.1} parent=19 // pred_check_branch
          %131 = sbr.rel (%p129) target = $region24
        $region23: #{_fused_prototypes_matmul.1} parent=19 // pred_region
          %s132 = smul.u32 16, %s19
          %p133 = scmp.lt.s32.totalorder %s132, 31
          %s134 = scalar_select %p133, %s132, 31
          %s135 = smul.addr %s134, 4
          %s136 = scalar_lea.vmem %s1, %s135
          %s137 = smul.u32 16, %s19
        $region24: #{_fused_prototypes_matmul.1} parent=19 // pred_fallthru
          _
      $region20: #{_fused_prototypes_matmul.1} parent=5 // pred_fallthru
        _
      %p138 = scmp.le.s32.totalorder 1, %s11
      %p139 = scmp.lt.s32.totalorder %s11, 3
      %p140 = pnand %p138, %p139
      %p141 = pneg %p140
      // Predicated region
      $region25: #{_fused_prototypes_matmul.1} parent=5 // pred_check
        _
      $region26: #{_fused_prototypes_matmul.1} parent=5 // pred_check_branch
        %143 = sbr.rel (%p140) target = $region28
      $region27: #{_fused_prototypes_matmul.1} parent=5 // pred_region
        %s144 = ssub.s32 %s11, 1
        %p145 = scmp.lt.s32.totalorder %s20, 0
        %s146 = scalar_select %p145, %s20, 0
        %s147 = smul.addr %s146, 4
        %s148 = scalar_lea.vmem %s0, %s147
        %p149 = pneg %p49
        %p150 = pneg %p46
        %s151 = smul.u32 16, %s21
        %p152 = scmp.lt.s32.totalorder %s151, 31
        %s153 = scalar_select %p152, %s151, 31
        %s154 = smul.addr %s153, 4
        %s155 = scalar_lea.vmem %s1, %s154
        %p156 = pneg %p75
        %p157 = pneg %p72
        %p158 = pneg %p103
        %p159 = pneg %p100
        %s160 = sand.u32 %s90, 1
        %s161 = scalar_lea.sflag [#allocation3], %s160
        %s162 = sand.u32 %s90, 1
        %s163 = smul.addr %s162, 8
        %s164 = scalar_lea.vmem [#allocation2], %s163
        %p165 = scmp.lt.s32.totalorder %s20, 0
        %s166 = scalar_select %p165, %s20, 0
        %s167 = smul.addr %s166, 4
        %s168 = scalar_lea.vmem %s0, %s167
        %s169 = smul.u32 16, %s21
        %p170 = scmp.lt.s32.totalorder %s169, 31
        %s171 = scalar_select %p170, %s169, 31
        %s172 = smul.addr %s171, 4
        %s173 = scalar_lea.vmem %s1, %s172
        %s174 = smul.u32 16, %s21
        %v176 = vld [vmem:[%s168] sm:$0xf]
        %v177 = vld [vmem:[%s173] sm:$0xf]
        %v178 = vld [vmem:[%s173 + $0x4] sm:$0xf]
        %v179 = vld [vmem:[%s173 + $0x8] sm:$0xf]
        %v180 = vld [vmem:[%s173 + $0xc] sm:$0xf]
        %v181 = vld [vmem:[%s173 + $0x10] sm:$0xf]
        %v182 = vld [vmem:[%s173 + $0x14] sm:$0xf]
        %v183 = vld [vmem:[%s173 + $0x18] sm:$0xf]
        %v184 = vld [vmem:[%s173 + $0x1c] sm:$0xf]
        %v185 = vld [vmem:[%s173 + $0x20] sm:$0xf]
        %v186 = vld [vmem:[%s173 + $0x24] sm:$0xf]
        %v187 = vld [vmem:[%s173 + $0x28] sm:$0xf]
        %v188 = vld [vmem:[%s173 + $0x2c] sm:$0xf]
        %v189 = vld [vmem:[%s173 + $0x30] sm:$0xf]
        %v190 = vld [vmem:[%s173 + $0x34] sm:$0xf]
        %v191 = vld [vmem:[%s173 + $0x38] sm:$0xf]
        %v192 = vld [vmem:[%s173 + $0x3c] sm:$0xf]
        %v209 = vunpack.c.l.b16 %v177
        %v210 = vunpack.c.l.b16 %v178
        %v211 = vunpack.c.l.b16 %v179
        %v212 = vunpack.c.l.b16 %v180
        %v213 = vunpack.c.l.b16 %v181
        %v214 = vunpack.c.l.b16 %v182
        %v215 = vunpack.c.l.b16 %v183
        %v216 = vunpack.c.l.b16 %v184
        %v217 = vunpack.c.l.b16 %v185
        %v218 = vunpack.c.l.b16 %v186
        %v219 = vunpack.c.l.b16 %v187
        %v220 = vunpack.c.l.b16 %v188
        %v221 = vunpack.c.l.b16 %v189
        %v222 = vunpack.c.l.b16 %v190
        %v223 = vunpack.c.l.b16 %v191
        %v224 = vunpack.c.l.b16 %v192
        %v225 = vpack.c.b16 %v210, %v209
        %v226 = vpack.c.b16 %v212, %v211
        %v227 = vpack.c.b16 %v214, %v213
        %v228 = vpack.c.b16 %v216, %v215
        %v229 = vpack.c.b16 %v218, %v217
        %v230 = vpack.c.b16 %v220, %v219
        %v231 = vpack.c.b16 %v222, %v221
        %v232 = vpack.c.b16 %v224, %v223
        %vm233 = vcmask 261120
        %v235 = vsel %vm233, %v176, 0
        %v238 = vsel %vm233, %v225, 0
        %v241 = vsel %vm233, %v226, 0
        %v244 = vsel %vm233, %v227, 0
        %v247 = vsel %vm233, %v228, 0
        %v250 = vsel %vm233, %v229, 0
        %v253 = vsel %vm233, %v230, 0
        %v256 = vsel %vm233, %v231, 0
        %v259 = vsel %vm233, %v232, 0
        %261 = vmatprep.subr.bf16.mxu0 0
        %262 = vmatpush1.bf16.xpose.msra.mxu0 %v238
        %263 = vmatprep.subr.bf16.mxu0 0
        %264 = vmatpush1.bf16.xpose.msra.mxu0 %v241
        %265 = vmatprep.subr.bf16.mxu0 0
        %266 = vmatpush1.bf16.xpose.msra.mxu0 %v244
        %267 = vmatprep.subr.bf16.mxu0 0
        %268 = vmatpush1.bf16.xpose.msra.mxu0 %v247
        %269 = vmatprep.subr.bf16.mxu0 0
        %270 = vmatpush1.bf16.xpose.msra.mxu0 %v250
        %271 = vmatprep.subr.bf16.mxu0 0
        %272 = vmatpush1.bf16.xpose.msra.mxu0 %v253
        %273 = vmatprep.subr.bf16.mxu0 0
        %274 = vmatpush1.bf16.xpose.msra.mxu0 %v256
        %275 = vmatprep.subr.bf16.mxu0 0
        %276 = vmatpush1.bf16.xpose.msra.mxu0 %v259
        %277 = vmatprep.subr.bf16.mxu0 0
        %278 = vmatpush1.bf16.xpose.msra.mxu0 0
        %279 = vmatprep.subr.bf16.mxu0 0
        %280 = vmatpush1.bf16.xpose.msra.mxu0 0
        %281 = vmatprep.subr.bf16.mxu0 0
        %282 = vmatpush1.bf16.xpose.msra.mxu0 0
        %283 = vmatprep.subr.bf16.mxu0 0
        %284 = vmatpush1.bf16.xpose.msra.mxu0 0
        %285 = vmatprep.subr.bf16.mxu0 0
        %286 = vmatpush1.bf16.xpose.msra.mxu0 0
        %287 = vmatprep.subr.bf16.mxu0 0
        %288 = vmatpush1.bf16.xpose.msra.mxu0 0
        %289 = vmatprep.subr.bf16.mxu0 0
        %290 = vmatpush1.bf16.xpose.msra.mxu0 0
        %291 = vmatprep.subr.bf16.mxu0 0
        %292 = vmatpush1.bf16.xpose.msra.mxu0 0
        %293 = vmatprep.mubr.bf16.mxu0 0
        %294 = vmatmul.mubr.bf16.gmra.mrb[0].mxu0 %v235
        %v295 = vpop.f32.mrb[0].mxu0
        %v296 = vadd.f32 0.0, %v295
        %v297 = vpop.f32.mrb[0].mxu0
        %v298 = vpop.f32.mrb[0].mxu0
        %v299 = vpop.f32.mrb[0].mxu0
        %300 = vdwg.mxu0
        %301 = vst [vmem:[%s164] sm:$0xff] %v296
        %s302 = sand.u32 %s90, 1
        %s303 = scalar_lea.sflag [#allocation3], %s302
        %s304 = sand.u32 %s90, 1
        %s305 = smul.addr %s304, 8
        %s306 = scalar_lea.vmem [#allocation2], %s305
        // Predicated region
        $region29: #{_fused_prototypes_matmul.1} parent=27 // pred_check
          %p307 = pneg %p100
        $region30: #{_fused_prototypes_matmul.1} parent=27 // pred_check_branch
          %309 = sbr.rel (%p307) target = $region32
        $region31: #{_fused_prototypes_matmul.1} parent=27 // pred_region
          %s311 = ssub.s32 128, 128
          %312 = vsyncadd %s303, %s311
          %s313 = smul.addr %s20, 2
          %s314 = sadd.s32 %s21, %s313
          %s315 = smul.addr %s314, 128
          %s316 = scalar_lea.hbm %s2, %s315
          %s318 = sshll.u32 %s306, 4
          %s319 = int_to_ptr.vmem [resolvable:$true] %s318
          %321 = dma.vmem_to_hbm [thread:$0]  %s319, 128, %s316, %s303
        $region32: #{_fused_prototypes_matmul.1} parent=27 // pred_fallthru
          _
      $region28: #{_fused_prototypes_matmul.1} parent=5 // pred_fallthru
        _
      %p322 = scmp.le.s32.totalorder 2, %s11
      // Predicated region
      $region33: #{_fused_prototypes_matmul.1} parent=5 // pred_check
        %p323 = pneg %p322
      $region34: #{_fused_prototypes_matmul.1} parent=5 // pred_check_branch
        %325 = sbr.rel (%p323) target = $region36
      $region35: #{_fused_prototypes_matmul.1} parent=5 // pred_region
        %s326 = ssub.s32 %s11, 2
        // Predicated region
        $region37: #{_fused_prototypes_matmul.1} parent=35 // pred_check
          %p327 = pneg %p106
        $region38: #{_fused_prototypes_matmul.1} parent=35 // pred_check_branch
          %329 = sbr.rel (%p327) target = $region40
        $region39: #{_fused_prototypes_matmul.1} parent=35 // pred_region
          %s330 = sand.u32 %s91, 1
          %s331 = scalar_lea.sflag [#allocation3], %s330
          %s332 = sand.u32 %s91, 1
          %s333 = smul.addr %s332, 8
          %s334 = scalar_lea.vmem [#allocation2], %s333
          %335 = dma.done %s331, 128
        $region40: #{_fused_prototypes_matmul.1} parent=35 // pred_fallthru
          _
      $region36: #{_fused_prototypes_matmul.1} parent=5 // pred_fallthru
        _
    $region6: #{_fused_prototypes_matmul.1} parent=1 // loop_footer
      %s15 = sadd.s32 1, %s11
    $region7: #{_fused_prototypes_matmul.1} parent=1 // loop_footer_branch
      %10 = sbr.rel target = $region3
    $region8: #{_fused_prototypes_matmul.1} parent=1 // loop_exit
      _
    %336 = vsyncpa [#allocation3], 1
    %s337 = scalar_lea.sflag [#allocation3], 1
    %338 = vsyncpa %s337, 1

</llo_original>
